<compile_context>
chip_gen: v7x
topology: tpu7x:2x2x1
jax: 0.10.0
libtpu: 0.0.40
codegen_flags: <defaults>
</compile_context>

<pallas_src>
import math
import jax
import jax.numpy as jnp
from jax.experimental import pallas as pl
from jax.experimental.pallas import tpu as pltpu

_P = 128  # lane-aligned block width for each of the fused Q|K|V output blocks


def _sa_kernel(x_ref, slab_ref, y_ref, probs_ref):
    B, S, E = x_ref.shape
    P = _P

    # Static views into the packed parameter slab (all sublane offsets 8-aligned,
    # all lane offsets 0- or 128-aligned).
    wqkv = slab_ref[0:E, :]                           # (E, 3P); Q block pre-scaled by E**-0.5
    wo   = slab_ref[E:2 * E, 0:E]                     # (E, E)
    bqkv = slab_ref[2 * E:2 * E + 1, :]               # (1, 3P); Q bias pre-scaled
    bo   = slab_ref[2 * E + 8:2 * E + 9, 0:E]         # (1, E)
    lnw  = slab_ref[2 * E + 16:2 * E + 17, 0:E]       # (1, E)
    lnb  = slab_ref[2 * E + 24:2 * E + 25, 0:E]       # (1, E)

    x = x_ref[...]                                    # (B, S, E) float32
    x2 = x.reshape(B * S, E)                          # major-dim collapse only

    # Fused, 128-lane-aligned Q|K|V projection: one MXU push; padded lanes are exact 0.
    qkv = jnp.dot(x2, wqkv, preferred_element_type=jnp.float32) + bqkv   # (B*S, 3P)
    q = qkv[:, 0:P].reshape(B, S, P)                  # whole-vreg lane slices
    k = qkv[:, P:2 * P].reshape(B, S, P)
    v = qkv[:, 2 * P:3 * P].reshape(B, S, P)

    # Attention scores: contraction over the (zero-padded) feature lanes; stable softmax.
    s = jnp.einsum('bqd,bkd->bqk', q, k, preferred_element_type=jnp.float32)   # (B, S, S)
    s = s - jnp.max(s, axis=-1, keepdims=True)
    p = jnp.exp(s)
    p = p * pl.reciprocal(jnp.sum(p, axis=-1, keepdims=True), approx=False)
    # TODO(synk): FairseqDropout(p=0.1) on the probs is identity at inference; training-mode
    # dropout is not implemented.

    attn = jnp.einsum('bqk,bkd->bqd', p, v, preferred_element_type=jnp.float32)  # (B, S, P)
    attn2 = attn.reshape(B * S, P)[:, 0:E]            # lane-prefix slice (offset 0, no rotate)
    o = jnp.dot(attn2, wo, preferred_element_type=jnp.float32) + bo              # (B*S, E)

    # LayerNorm(embed_dim), eps=1e-5 (before the residual add, as in SA.forward).
    # One-pass variance: the two cross-lane reductions are independent.
    mu = jnp.mean(o, axis=-1, keepdims=True)
    m2 = jnp.mean(o * o, axis=-1, keepdims=True)
    var = m2 - mu * mu
    o = (o - mu) * jax.lax.rsqrt(var + 1e-5) * lnw + lnb

    y_ref[...] = x + o.reshape(B, S, E)
    probs_ref[...] = p


def prepare_params(params):
    """One-time parameter packing (run at param-prep time, NOT per forward call).

    Slab layout (rows, 3*128 lanes), float32:
      rows [0, E)        : fused Q|K|V weights, Q pre-scaled by E**-0.5,
                           Q at lanes [0,128), K at [128,256), V at [256,384), zero pad
      rows [E, 2E)       : out_proj weight (E, E) at lanes [0, E)
      row  2E            : fused Q|K|V bias (Q bias pre-scaled), same lane blocks
      row  2E + 8        : out_proj bias at lanes [0, E)
      row  2E + 16       : LayerNorm weight at lanes [0, E)
      row  2E + 24       : LayerNorm bias at lanes [0, E)
    """
    wq, bq, wk, bk, wv, bv, wo, bo, lnw, lnb = params
    E = wq.shape[0]
    P = _P
    scaling = E ** -0.5

    slab = jnp.zeros((2 * E + 32, 3 * P), jnp.float32)
    slab = slab.at[0:E, 0:E].set(wq * scaling)
    slab = slab.at[0:E, P:P + E].set(wk)
    slab = slab.at[0:E, 2 * P:2 * P + E].set(wv)
    slab = slab.at[E:2 * E, 0:E].set(wo)
    slab = slab.at[2 * E, 0:E].set(bq[0] * scaling)
    slab = slab.at[2 * E, P:P + E].set(bk[0])
    slab = slab.at[2 * E, 2 * P:2 * P + E].set(bv[0])
    slab = slab.at[2 * E + 8, 0:E].set(bo[0])
    slab = slab.at[2 * E + 16, 0:E].set(lnw[0])
    slab = slab.at[2 * E + 24, 0:E].set(lnb[0])
    return slab


@jax.jit
def psycho_encoder_forward(x, slab):
    """x: (B, S, E) float32.  slab: packed params from prepare_params()."""
    B, S, E = x.shape
    P = _P
    vmem_spec = pl.BlockSpec(memory_space=pltpu.MemorySpace.VMEM)

    flops = 2 * B * S * (3 * E * P + 2 * S * P + E * E)
    transcendentals = B * S * S + 2 * B * S                      # exp + recip + rsqrt
    bytes_accessed = 4 * (2 * B * S * E + B * S * S + slab.shape[0] * slab.shape[1])

    y, probs = pl.pallas_call(
        _sa_kernel,
        out_shape=(
            jax.ShapeDtypeStruct((B, S, E), jnp.float32),
            jax.ShapeDtypeStruct((B, S, S), jnp.float32),
        ),
        in_specs=[vmem_spec, vmem_spec],
        out_specs=(vmem_spec, vmem_spec),
        cost_estimate=pl.CostEstimate(flops=flops,
                                      transcendentals=transcendentals,
                                      bytes_accessed=bytes_accessed),
    )(x, slab)
    return y, probs


def init_params(key, E):
    """Deterministic init matching SA.__init__ shapes (weights stored as (in,out))."""
    ks = jax.random.split(key, 7)
    xavier_gain_half = (1.0 / math.sqrt(2)) * math.sqrt(6.0 / (E + E))
    xavier_gain_one = math.sqrt(6.0 / (E + E))
    lin_bias_bound = 1.0 / math.sqrt(E)

    wq = jax.random.uniform(ks[0], (E, E), jnp.float32, -xavier_gain_half, xavier_gain_half)
    wk = jax.random.uniform(ks[1], (E, E), jnp.float32, -xavier_gain_half, xavier_gain_half)
    wv = jax.random.uniform(ks[2], (E, E), jnp.float32, -xavier_gain_half, xavier_gain_half)
    wo = jax.random.uniform(ks[3], (E, E), jnp.float32, -xavier_gain_one, xavier_gain_one)
    bq = jax.random.uniform(ks[4], (1, E), jnp.float32, -lin_bias_bound, lin_bias_bound)
    bk = jax.random.uniform(ks[5], (1, E), jnp.float32, -lin_bias_bound, lin_bias_bound)
    bv = jax.random.uniform(ks[6], (1, E), jnp.float32, -lin_bias_bound, lin_bias_bound)
    bo = jnp.zeros((1, E), jnp.float32)        # nn.init.constant_(out_proj.bias, 0.0)
    lnw = jnp.ones((1, E), jnp.float32)        # LayerNorm weight
    lnb = jnp.zeros((1, E), jnp.float32)       # LayerNorm bias
    return (wq, bq, wk, bk, wv, bv, wo, bo, lnw, lnb)


def _reference(x, params):
    """Plain-JAX reference mirroring SA.forward(query, layer_norm=True)."""
    wq, bq, wk, bk, wv, bv, wo, bo, lnw, lnb = params
    E = x.shape[-1]
    q = (x @ wq + bq) * (E ** -0.5)
    k = x @ wk + bk
    v = x @ wv + bv
    s = jnp.einsum('bqd,bkd->bqk', q, k)
    p = jax.nn.softmax(s, axis=-1)
    attn = jnp.einsum('bqk,bkd->bqd', p, v)
    o = attn @ wo + bo
    mu = o.mean(-1, keepdims=True)
    var = ((o - mu) ** 2).mean(-1, keepdims=True)
    o = (o - mu) / jnp.sqrt(var + 1e-5) * lnw + lnb
    return x + o, p


if __name__ == "__main__":
    B, S, E = 2, 8, 32            # batch, #psycho tokens, psycho_dim
    key = jax.random.PRNGKey(0)
    kx, kp = jax.random.split(key)
    x = jax.random.normal(kx, (B, S, E), jnp.float32)
    params = init_params(kp, E)
    slab = jax.block_until_ready(prepare_params(params))   # one-time packing, off the call path

    y, probs = psycho_encoder_forward(x, slab)
    y = jax.block_until_ready(y)
    probs = jax.block_until_ready(probs)

    y_ref, p_ref = _reference(x, params)
    assert jnp.allclose(y, y_ref, atol=1e-4, rtol=1e-4)
    assert jnp.allclose(probs, p_ref, atol=1e-5, rtol=1e-4)
    print("KERNEL_OK")
</pallas_src>

<mosaic_0001>
module attributes {stable_mosaic.version = 11 : i64} {
  func.func @_sa_kernel(%arg0: memref<2x8x32xf32, #tpu.memory_space<vmem>>, %arg1: memref<96x384xf32, #tpu.memory_space<vmem>>, %arg2: memref<2x8x32xf32, #tpu.memory_space<vmem>>, %arg3: memref<2x8x8xf32, #tpu.memory_space<vmem>>) attributes {dimension_semantics = [], scalar_prefetch = 0 : i64, scratch_operands = 0 : i64, tpu.core_type = #tpu.core_type<tc>} {
    %c0 = arith.constant 0 : index
    %c0_0 = arith.constant 0 : index
    %0 = vector.load %arg1[%c0, %c0_0] : memref<96x384xf32, #tpu.memory_space<vmem>>, vector<32x384xf32>
    %c32 = arith.constant 32 : index
    %c0_1 = arith.constant 0 : index
    %1 = vector.load %arg1[%c32, %c0_1] : memref<96x384xf32, #tpu.memory_space<vmem>>, vector<32x32xf32>
    %c64 = arith.constant 64 : index
    %c0_2 = arith.constant 0 : index
    %2 = vector.load %arg1[%c64, %c0_2] : memref<96x384xf32, #tpu.memory_space<vmem>>, vector<1x384xf32>
    %c72 = arith.constant 72 : index
    %c0_3 = arith.constant 0 : index
    %3 = vector.load %arg1[%c72, %c0_3] : memref<96x384xf32, #tpu.memory_space<vmem>>, vector<1x32xf32>
    %c80 = arith.constant 80 : index
    %c0_4 = arith.constant 0 : index
    %4 = vector.load %arg1[%c80, %c0_4] : memref<96x384xf32, #tpu.memory_space<vmem>>, vector<1x32xf32>
    %c88 = arith.constant 88 : index
    %c0_5 = arith.constant 0 : index
    %5 = vector.load %arg1[%c88, %c0_5] : memref<96x384xf32, #tpu.memory_space<vmem>>, vector<1x32xf32>
    %c0_6 = arith.constant 0 : index
    %c0_7 = arith.constant 0 : index
    %c0_8 = arith.constant 0 : index
    %6 = vector.load %arg0[%c0_6, %c0_7, %c0_8] : memref<2x8x32xf32, #tpu.memory_space<vmem>>, vector<2x8x32xf32>
    %7 = vector.shape_cast %6 : vector<2x8x32xf32> to vector<16x32xf32>
    %cst = arith.constant dense<0.000000e+00> : vector<16x384xf32>
    %8 = tpu.matmul %7, %0, %cst {dimension_numbers = #tpu.dot_dimension_numbers<[1], [0], [0], [1], [0, 0, 1, 1], [], []>} : vector<16x32xf32>, vector<32x384xf32>, vector<16x384xf32> -> vector<16x384xf32>
    %9 = vector.broadcast %2 : vector<1x384xf32> to vector<16x384xf32>
    %10 = arith.addf %8, %9 : vector<16x384xf32>
    %11 = vector.extract_strided_slice %10 {offsets = [0, 0], sizes = [16, 128], strides = [1, 1]} : vector<16x384xf32> to vector<16x128xf32>
    %12 = vector.shape_cast %11 : vector<16x128xf32> to vector<2x8x128xf32>
    %13 = vector.extract_strided_slice %10 {offsets = [0, 128], sizes = [16, 128], strides = [1, 1]} : vector<16x384xf32> to vector<16x128xf32>
    %14 = vector.shape_cast %13 : vector<16x128xf32> to vector<2x8x128xf32>
    %15 = vector.extract_strided_slice %10 {offsets = [0, 256], sizes = [16, 128], strides = [1, 1]} : vector<16x384xf32> to vector<16x128xf32>
    %16 = vector.shape_cast %15 : vector<16x128xf32> to vector<2x8x128xf32>
    "tpu.trace_start"() <{level = 10 : i32, message = "bqd,bkd->bqk"}> : () -> ()
    %cst_9 = arith.constant dense<0.000000e+00> : vector<2x8x8xf32>
    %17 = tpu.matmul %12, %14, %cst_9 {dimension_numbers = #tpu.dot_dimension_numbers<[2], [2], [1], [1], [0, 0, 0, 1, 1, 1], [0], [0]>} : vector<2x8x128xf32>, vector<2x8x128xf32>, vector<2x8x8xf32> -> vector<2x8x8xf32>
    "tpu.trace_stop"() : () -> ()
    %cst_10 = arith.constant dense<0xFF800000> : vector<2x8xf32>
    %18 = vector.multi_reduction <maximumf>, %17, %cst_10 [2] : vector<2x8x8xf32> to vector<2x8xf32>
    %19 = vector.shape_cast %18 : vector<2x8xf32> to vector<2x8x1xf32>
    %20 = vector.broadcast %19 : vector<2x8x1xf32> to vector<2x8x8xf32>
    %21 = arith.subf %17, %20 : vector<2x8x8xf32>
    %22 = math.exp %21 : vector<2x8x8xf32>
    %cst_11 = arith.constant dense<0.000000e+00> : vector<2x8xf32>
    %23 = vector.multi_reduction <add>, %22, %cst_11 [2] : vector<2x8x8xf32> to vector<2x8xf32>
    %24 = vector.shape_cast %23 : vector<2x8xf32> to vector<2x8x1xf32>
    %25 = tpu.reciprocal %24 : vector<2x8x1xf32> -> vector<2x8x1xf32>
    %26 = vector.broadcast %25 : vector<2x8x1xf32> to vector<2x8x8xf32>
    %27 = arith.mulf %22, %26 : vector<2x8x8xf32>
    "tpu.trace_start"() <{level = 10 : i32, message = "bqk,bkd->bqd"}> : () -> ()
    %cst_12 = arith.constant dense<0.000000e+00> : vector<2x8x128xf32>
    %28 = tpu.matmul %27, %16, %cst_12 {dimension_numbers = #tpu.dot_dimension_numbers<[2], [1], [1], [2], [0, 0, 0, 1, 1, 2], [0], [0]>} : vector<2x8x8xf32>, vector<2x8x128xf32>, vector<2x8x128xf32> -> vector<2x8x128xf32>
    "tpu.trace_stop"() : () -> ()
    %29 = vector.shape_cast %28 : vector<2x8x128xf32> to vector<16x128xf32>
    %30 = vector.extract_strided_slice %29 {offsets = [0, 0], sizes = [16, 32], strides = [1, 1]} : vector<16x128xf32> to vector<16x32xf32>
    %cst_13 = arith.constant dense<0.000000e+00> : vector<16x32xf32>
    %31 = tpu.matmul %30, %1, %cst_13 {dimension_numbers = #tpu.dot_dimension_numbers<[1], [0], [0], [1], [0, 0, 1, 1], [], []>} : vector<16x32xf32>, vector<32x32xf32>, vector<16x32xf32> -> vector<16x32xf32>
    %32 = vector.broadcast %3 : vector<1x32xf32> to vector<16x32xf32>
    %33 = arith.addf %31, %32 : vector<16x32xf32>
    %cst_14 = arith.constant dense<0.000000e+00> : vector<16xf32>
    %34 = vector.multi_reduction <add>, %33, %cst_14 [1] : vector<16x32xf32> to vector<16xf32>
    %35 = vector.shape_cast %34 : vector<16xf32> to vector<16x1xf32>
    %cst_15 = arith.constant 3.200000e+01 : f32
    %36 = vector.broadcast %cst_15 : f32 to vector<16x1xf32>
    %37 = arith.divf %35, %36 : vector<16x1xf32>
    %38 = arith.mulf %33, %33 : vector<16x32xf32>
    %cst_16 = arith.constant dense<0.000000e+00> : vector<16xf32>
    %39 = vector.multi_reduction <add>, %38, %cst_16 [1] : vector<16x32xf32> to vector<16xf32>
    %40 = vector.shape_cast %39 : vector<16xf32> to vector<16x1xf32>
    %cst_17 = arith.constant 3.200000e+01 : f32
    %41 = vector.broadcast %cst_17 : f32 to vector<16x1xf32>
    %42 = arith.divf %40, %41 : vector<16x1xf32>
    %43 = arith.mulf %37, %37 : vector<16x1xf32>
    %44 = arith.subf %42, %43 : vector<16x1xf32>
    %45 = vector.broadcast %37 : vector<16x1xf32> to vector<16x32xf32>
    %46 = arith.subf %33, %45 : vector<16x32xf32>
    %cst_18 = arith.constant 9.99999974E-6 : f32
    %47 = vector.broadcast %cst_18 : f32 to vector<16x1xf32>
    %48 = arith.addf %44, %47 : vector<16x1xf32>
    %49 = math.rsqrt %48 : vector<16x1xf32>
    %50 = vector.broadcast %49 : vector<16x1xf32> to vector<16x32xf32>
    %51 = arith.mulf %46, %50 : vector<16x32xf32>
    %52 = vector.broadcast %4 : vector<1x32xf32> to vector<16x32xf32>
    %53 = arith.mulf %51, %52 : vector<16x32xf32>
    %54 = vector.broadcast %5 : vector<1x32xf32> to vector<16x32xf32>
    %55 = arith.addf %53, %54 : vector<16x32xf32>
    %56 = vector.shape_cast %55 : vector<16x32xf32> to vector<2x8x32xf32>
    %57 = arith.addf %6, %56 : vector<2x8x32xf32>
    %c0_19 = arith.constant 0 : index
    %c0_20 = arith.constant 0 : index
    %c0_21 = arith.constant 0 : index
    %58 = vector.load %arg2[%c0_19, %c0_20, %c0_21] : memref<2x8x32xf32, #tpu.memory_space<vmem>>, vector<2x8x32xf32>
    tpu.vector_store %arg2[%c0_19, %c0_20, %c0_21], %57 {strides = array<i32>} : memref<2x8x32xf32, #tpu.memory_space<vmem>>, vector<2x8x32xf32>,
    %c0_22 = arith.constant 0 : index
    %c0_23 = arith.constant 0 : index
    %c0_24 = arith.constant 0 : index
    %59 = vector.load %arg3[%c0_22, %c0_23, %c0_24] : memref<2x8x8xf32, #tpu.memory_space<vmem>>, vector<2x8x8xf32>
    tpu.vector_store %arg3[%c0_22, %c0_23, %c0_24], %27 {strides = array<i32>} : memref<2x8x8xf32, #tpu.memory_space<vmem>>, vector<2x8x8xf32>,
    return
  }
}

</mosaic_0001>

<llo_original>
// kernel: psycho_encoder_forward.1
$region0: #{psycho_encoder_forward.1}
  #allocation0 [shape = 'u32[]', space=smem, size = 0x4, offset = 0x4, fixed_abs, tag = 'smem constant byte address 0x4 - core index']
  #allocation1 [shape = 'u32[144,128]{1,0:T(1,128)}', space=vmem, size = 0x12000, scoped, tag = 'internal scratch']
  %s0 = inlined_call_operand.hbm [shape: f32[2,8,32], index: 0, kind: input, shape index: {}]
  %s1 = inlined_call_operand.hbm [shape: f32[96,384], index: 1, kind: input, shape index: {}]
  %s2 = inlined_call_operand.hbm [shape: f32[2,8,32], index: 2, kind: output, shape index: {0}]
  %s3 = inlined_call_operand.hbm [shape: f32[2,8,8], index: 3, kind: output, shape index: {1}]
  %4 = xla_tuple %s2, %s3
  %s5 = sld [smem:[#allocation0]]
  $region34: #{psycho_encoder_forward.1} parent=0
    _
  %s7 = ssub.s32 1, %s5
  %s8 = scalar_select 0, %s7, %s5
  $region1: #{psycho_encoder_forward.1} parent=0
    #allocation2 [shape = 'u8[8192]{0}', space=vmem, size = 0x2000, scoped, tag = 'input window, operand 0, single buffered']
    #allocation3 [shape = 's32[1]{0}', space=sflag, size = 0x4, scoped, tag = 'scoped memory for psycho_encoder_forward.1']
    #allocation4 [shape = 's32[1]{0}', space=sflag, size = 0x4, scoped, tag = 'scoped memory for psycho_encoder_forward.1']
    #allocation5 [shape = 'u8[147456]{0}', space=vmem, size = 0x24000, scoped, tag = 'input window, operand 1, single buffered']
    #allocation6 [shape = 's32[1]{0}', space=sflag, size = 0x4, scoped, tag = 'scoped memory for psycho_encoder_forward.1']
    #allocation7 [shape = 'u8[8192]{0}', space=vmem, size = 0x2000, scoped, tag = 'output window, operand 0, single buffered']
    #allocation8 [shape = 'u8[8192]{0}', space=vmem, size = 0x2000, scoped, tag = 'output window, operand 1, single buffered']
    #allocation9 [shape = 's32[1]{0}', space=sflag, size = 0x4, scoped, tag = 'scoped memory for psycho_encoder_forward.1']
    %9 = vsyncpa [#allocation3], 0
    %10 = vsyncpa [#allocation6], 0
    %11 = vsyncpa [#allocation4], 0
    %12 = vsyncpa [#allocation9], 0
    // Predicated region
    $region2: #{psycho_encoder_forward.1} parent=1 // pred_check
      _
    $region3: #{psycho_encoder_forward.1} parent=1 // pred_check_branch
      %14 = sbr.rel (0) target = $region5
    $region4: #{psycho_encoder_forward.1} parent=1 // pred_region
      %s16 = ssub.s32 256, 256
      %17 = vsyncadd [#allocation3], %s16
      %s18 = sshll.u32 [#allocation2], 4
      %s19 = int_to_ptr.vmem [resolvable:$true] %s18
      %24 = dma.hbm_to_vmem [thread:$0]  %s0, 256, %s19, [#allocation3], 128, 128, 8
    $region5: #{psycho_encoder_forward.1} parent=1 // pred_fallthru
      _
    // Predicated region
    $region6: #{psycho_encoder_forward.1} parent=1 // pred_check
      _
    $region7: #{psycho_encoder_forward.1} parent=1 // pred_check_branch
      %26 = sbr.rel (0) target = $region9
    $region8: #{psycho_encoder_forward.1} parent=1 // pred_region
      %s28 = ssub.s32 4608, 4608
      %29 = vsyncadd [#allocation6], %s28
      %s30 = sshll.u32 [#allocation5], 4
      %s31 = int_to_ptr.vmem [resolvable:$true] %s30
      %36 = dma.hbm_to_vmem [thread:$0]  %s1, 4608, %s31, [#allocation6], 384, 384, 24
    $region9: #{psycho_encoder_forward.1} parent=1 // pred_fallthru
      _
    // Predicated region
    $region10: #{psycho_encoder_forward.1} parent=1 // pred_check
      _
    $region11: #{psycho_encoder_forward.1} parent=1 // pred_check_branch
      %38 = sbr.rel (0) target = $region13
    $region12: #{psycho_encoder_forward.1} parent=1 // pred_region
      %39 = dma.done [#allocation3], 256
    $region13: #{psycho_encoder_forward.1} parent=1 // pred_fallthru
      _
    // Predicated region
    $region14: #{psycho_encoder_forward.1} parent=1 // pred_check
      _
    $region15: #{psycho_encoder_forward.1} parent=1 // pred_check_branch
      %41 = sbr.rel (0) target = $region17
    $region16: #{psycho_encoder_forward.1} parent=1 // pred_region
      %42 = dma.done [#allocation6], 4608
    $region17: #{psycho_encoder_forward.1} parent=1 // pred_fallthru
      _
    %v43 = vld [vmem:[#allocation5] sm:$0xff]
    %v44 = vld [vmem:[#allocation5 + $0x8] sm:$0xff]
    %v45 = vld [vmem:[#allocation5 + $0x10] sm:$0xff]
    %v46 = vld [vmem:[#allocation5 + $0x18] sm:$0xff]
    %v47 = vld [vmem:[#allocation5 + $0x20] sm:$0xff]
    %v48 = vld [vmem:[#allocation5 + $0x28] sm:$0xff]
    %v49 = vld [vmem:[#allocation5 + $0x30] sm:$0xff]
    %v50 = vld [vmem:[#allocation5 + $0x38] sm:$0xff]
    %v51 = vld [vmem:[#allocation5 + $0x40] sm:$0xff]
    %v52 = vld [vmem:[#allocation5 + $0x48] sm:$0xff]
    %v53 = vld [vmem:[#allocation5 + $0x50] sm:$0xff]
    %v54 = vld [vmem:[#allocation5 + $0x58] sm:$0xff]
    %v55 = vld [vmem:[#allocation5 + $0x60] sm:$0xff]
    %v56 = vld [vmem:[#allocation5 + $0x78] sm:$0xff]
    %v57 = vld [vmem:[#allocation5 + $0x90] sm:$0xff]
    %v58 = vld [vmem:[#allocation5 + $0xa8] sm:$0xff]
    %s59 = scalar_lea.vmem [#allocation5], 192
    %v60 = vld [vmem:[%s59] ss:$8 sm:$0x7]
    %v61 = vld [vmem:[#allocation5 + $0xd8] ss:$0 sm:$0xff]
    %v62 = vld [vmem:[#allocation5 + $0xf0] ss:$0 sm:$0xff]
    %v63 = vld [vmem:[#allocation5 + $0x108] ss:$0 sm:$0xff]
    %v64 = vld [vmem:[#allocation2] sm:$0xff]
    %v65 = vld [vmem:[#allocation2 + $0x8] sm:$0xff]
    %v67 = vlaneseq
    %v68 = vshrl.u32 %v67, 7
    %v69 = vsub.s32 0, %v68
    %v70 = vrot.slane %v60, %v69
    %v71 = vlaneseq
    %v72 = vshrl.u32 %v71, 7
    %v73 = vsub.s32 1, %v72
    %v74 = vrot.slane %v60, %v73
    %v75 = vlaneseq
    %v76 = vshrl.u32 %v75, 7
    %v77 = vsub.s32 2, %v76
    %v78 = vrot.slane %v60, %v77
    %vm82 = vcmask 261120
    %v84 = vsel %vm82, %v64, 0
    %v87 = vsel %vm82, %v65, 0
    %89 = vmatprep.subr.mxu0 %v44
    %90 = vmatpush1.msra.mxu0 %v43
    %91 = vmatprep.subr.mxu0 %v47
    %92 = vmatpush1.msra.mxu0 %v46
    %93 = vmatprep.subr.mxu0 %v50
    %94 = vmatpush1.msra.mxu0 %v49
    %95 = vmatprep.subr.mxu0 %v53
    %96 = vmatpush1.msra.mxu0 %v52
    %97 = vmatprep.subr.mxu0 0.0
    %98 = vmatpush1.msra.mxu0 0.0
    %99 = vmatprep.subr.mxu0 0.0
    %100 = vmatpush1.msra.mxu0 0.0
    %101 = vmatprep.subr.mxu0 0.0
    %102 = vmatpush1.msra.mxu0 0.0
    %103 = vmatprep.subr.mxu0 0.0
    %104 = vmatpush1.msra.mxu0 0.0
    %105 = vmatprep.subr.mxu0 0.0
    %106 = vmatpush1.msra.mxu0 0.0
    %107 = vmatprep.subr.mxu0 0.0
    %108 = vmatpush1.msra.mxu0 0.0
    %109 = vmatprep.subr.mxu0 0.0
    %110 = vmatpush1.msra.mxu0 0.0
    %111 = vmatprep.subr.mxu0 0.0
    %112 = vmatpush1.msra.mxu0 0.0
    %113 = vmatprep.subr.mxu0 0.0
    %114 = vmatpush1.msra.mxu0 0.0
    %115 = vmatprep.subr.mxu0 0.0
    %116 = vmatpush1.msra.mxu0 0.0
    %117 = vmatprep.subr.mxu0 0.0
    %118 = vmatpush1.msra.mxu0 0.0
    %119 = vmatprep.subr.mxu0 0.0
    %120 = vmatpush1.msra.mxu0 0.0
    %121 = vmatprep.subr.mxu0 0.0
    %122 = vmatpush1.msra.mxu0 0.0
    %123 = vmatprep.subr.mxu0 0.0
    %124 = vmatpush1.msra.mxu0 0.0
    %125 = vmatprep.subr.mxu0 0.0
    %126 = vmatpush1.msra.mxu0 0.0
    %127 = vmatprep.subr.mxu0 0.0
    %128 = vmatpush1.msra.mxu0 0.0
    %129 = vmatprep.subr.mxu0 0.0
    %130 = vmatpush1.msra.mxu0 0.0
    %131 = vmatprep.subr.mxu0 0.0
    %132 = vmatpush1.msra.mxu0 0.0
    %133 = vmatprep.subr.mxu0 0.0
    %134 = vmatpush1.msra.mxu0 0.0
    %135 = vmatprep.subr.mxu0 0.0
    %136 = vmatpush1.msra.mxu0 0.0
    %137 = vmatprep.subr.mxu0 0.0
    %138 = vmatpush1.msra.mxu0 0.0
    %139 = vmatprep.subr.mxu0 0.0
    %140 = vmatpush1.msra.mxu0 0.0
    %141 = vmatprep.subr.mxu0 0.0
    %142 = vmatpush1.msra.mxu0 0.0
    %143 = vmatprep.subr.mxu0 0.0
    %144 = vmatpush1.msra.mxu0 0.0
    %145 = vmatprep.subr.mxu0 0.0
    %146 = vmatpush1.msra.mxu0 0.0
    %147 = vmatprep.subr.mxu0 0.0
    %148 = vmatpush1.msra.mxu0 0.0
    %149 = vmatprep.subr.mxu0 0.0
    %150 = vmatpush1.msra.mxu0 0.0
    %151 = vmatprep.subr.mxu0 0.0
    %152 = vmatpush1.msra.mxu0 0.0
    %153 = vmatprep.mubr.f32.mxu0 0.0
    %154 = vmatmul.mubr.f32.gmra.mrb[0].mxu0 %v84
    %v155 = vpop.f32.mrb[0].mxu0
    %v156 = vadd.f32 %v70, %v155
    %v157 = vpop.f32.mrb[0].mxu0
    %v158 = vadd.f32 %v74, %v157
    %159 = vmatprep.mubr.f32.mxu0 0.0
    %160 = vmatmul.mubr.f32.gmra.mrb[0].mxu0 %v87
    %v161 = vpop.f32.mrb[0].mxu0
    %v162 = vadd.f32 %v70, %v161
    %v163 = vpop.f32.mrb[0].mxu0
    %v164 = vadd.f32 %v74, %v163
    %165 = vdwg.mxu0
    %166 = vmatprep.subr.mxu0 0.0
    %167 = vmatpush1.msra.mxu0 %v45
    %168 = vmatprep.subr.mxu0 0.0
    %169 = vmatpush1.msra.mxu0 %v48
    %170 = vmatprep.subr.mxu0 0.0
    %171 = vmatpush1.msra.mxu0 %v51
    %172 = vmatprep.subr.mxu0 0.0
    %173 = vmatpush1.msra.mxu0 %v54
    %174 = vmatprep.subr.mxu0 0.0
    %175 = vmatpush1.msra.mxu0 0.0
    %176 = vmatprep.subr.mxu0 0.0
    %177 = vmatpush1.msra.mxu0 0.0
    %178 = vmatprep.subr.mxu0 0.0
    %179 = vmatpush1.msra.mxu0 0.0
    %180 = vmatprep.subr.mxu0 0.0
    %181 = vmatpush1.msra.mxu0 0.0
    %182 = vmatprep.subr.mxu0 0.0
    %183 = vmatpush1.msra.mxu0 0.0
    %184 = vmatprep.subr.mxu0 0.0
    %185 = vmatpush1.msra.mxu0 0.0
    %186 = vmatprep.subr.mxu0 0.0
    %187 = vmatpush1.msra.mxu0 0.0
    %188 = vmatprep.subr.mxu0 0.0
    %189 = vmatpush1.msra.mxu0 0.0
    %190 = vmatprep.subr.mxu0 0.0
    %191 = vmatpush1.msra.mxu0 0.0
    %192 = vmatprep.subr.mxu0 0.0
    %193 = vmatpush1.msra.mxu0 0.0
    %194 = vmatprep.subr.mxu0 0.0
    %195 = vmatpush1.msra.mxu0 0.0
    %196 = vmatprep.subr.mxu0 0.0
    %197 = vmatpush1.msra.mxu0 0.0
    %198 = vmatprep.subr.mxu0 0.0
    %199 = vmatpush1.msra.mxu0 0.0
    %200 = vmatprep.subr.mxu0 0.0
    %201 = vmatpush1.msra.mxu0 0.0
    %202 = vmatprep.subr.mxu0 0.0
    %203 = vmatpush1.msra.mxu0 0.0
    %204 = vmatprep.subr.mxu0 0.0
    %205 = vmatpush1.msra.mxu0 0.0
    %206 = vmatprep.subr.mxu0 0.0
    %207 = vmatpush1.msra.mxu0 0.0
    %208 = vmatprep.subr.mxu0 0.0
    %209 = vmatpush1.msra.mxu0 0.0
    %210 = vmatprep.subr.mxu0 0.0
    %211 = vmatpush1.msra.mxu0 0.0
    %212 = vmatprep.subr.mxu0 0.0
    %213 = vmatpush1.msra.mxu0 0.0
    %214 = vmatprep.subr.mxu0 0.0
    %215 = vmatpush1.msra.mxu0 0.0
    %216 = vmatprep.subr.mxu0 0.0
    %217 = vmatpush1.msra.mxu0 0.0
    %218 = vmatprep.subr.mxu0 0.0
    %219 = vmatpush1.msra.mxu0 0.0
    %220 = vmatprep.subr.mxu0 0.0
    %221 = vmatpush1.msra.mxu0 0.0
    %222 = vmatprep.subr.mxu0 0.0
    %223 = vmatpush1.msra.mxu0 0.0
    %224 = vmatprep.subr.mxu0 0.0
    %225 = vmatpush1.msra.mxu0 0.0
    %226 = vmatprep.subr.mxu0 0.0
    %227 = vmatpush1.msra.mxu0 0.0
    %228 = vmatprep.subr.mxu0 0.0
    %229 = vmatpush1.msra.mxu0 0.0
    %230 = vmatprep.mubr.f32.mxu0 0.0
    %231 = vmatmul.mubr.f32.gmra.mrb[0].mxu0 %v84
    %v232 = vpop.f32.mrb[0].mxu0
    %v233 = vadd.f32 %v78, %v232
    %v234 = vpop.f32.mrb[0].mxu0
    %235 = vmatprep.mubr.f32.mxu0 0.0
    %236 = vmatmul.mubr.f32.gmra.mrb[0].mxu0 %v87
    %v237 = vpop.f32.mrb[0].mxu0
    %v238 = vadd.f32 %v78, %v237
    %v239 = vpop.f32.mrb[0].mxu0
    %240 = vdwg.mxu0
    %241 = vmatprep.subr.mxu0 0.0
    %242 = vmatpush1.xpose.msra.mxu0 %v158
    %243 = vmatprep.subr.mxu0 0.0
    %244 = vmatpush1.xpose.msra.mxu0 0.0
    %245 = vmatprep.subr.mxu0 0.0
    %246 = vmatpush1.xpose.msra.mxu0 0.0
    %247 = vmatprep.subr.mxu0 0.0
    %248 = vmatpush1.xpose.msra.mxu0 0.0
    %249 = vmatprep.subr.mxu0 0.0
    %250 = vmatpush1.xpose.msra.mxu0 0.0
    %251 = vmatprep.subr.mxu0 0.0
    %252 = vmatpush1.xpose.msra.mxu0 0.0
    %253 = vmatprep.subr.mxu0 0.0
    %254 = vmatpush1.xpose.msra.mxu0 0.0
    %255 = vmatprep.subr.mxu0 0.0
    %256 = vmatpush1.xpose.msra.mxu0 0.0
    %257 = vmatprep.subr.mxu0 0.0
    %258 = vmatpush1.xpose.msra.mxu0 0.0
    %259 = vmatprep.subr.mxu0 0.0
    %260 = vmatpush1.xpose.msra.mxu0 0.0
    %261 = vmatprep.subr.mxu0 0.0
    %262 = vmatpush1.xpose.msra.mxu0 0.0
    %263 = vmatprep.subr.mxu0 0.0
    %264 = vmatpush1.xpose.msra.mxu0 0.0
    %265 = vmatprep.subr.mxu0 0.0
    %266 = vmatpush1.xpose.msra.mxu0 0.0
    %267 = vmatprep.subr.mxu0 0.0
    %268 = vmatpush1.xpose.msra.mxu0 0.0
    %269 = vmatprep.subr.mxu0 0.0
    %270 = vmatpush1.xpose.msra.mxu0 0.0
    %271 = vmatprep.subr.mxu0 0.0
    %272 = vmatpush1.xpose.msra.mxu0 0.0
    %273 = vmatprep.subr.mxu0 0.0
    %274 = vmatpush1.xpose.msra.mxu0 0.0
    %275 = vmatprep.subr.mxu0 0.0
    %276 = vmatpush1.xpose.msra.mxu0 0.0
    %277 = vmatprep.subr.mxu0 0.0
    %278 = vmatpush1.xpose.msra.mxu0 0.0
    %279 = vmatprep.subr.mxu0 0.0
    %280 = vmatpush1.xpose.msra.mxu0 0.0
    %281 = vmatprep.subr.mxu0 0.0
    %282 = vmatpush1.xpose.msra.mxu0 0.0
    %283 = vmatprep.subr.mxu0 0.0
    %284 = vmatpush1.xpose.msra.mxu0 0.0
    %285 = vmatprep.subr.mxu0 0.0
    %286 = vmatpush1.xpose.msra.mxu0 0.0
    %287 = vmatprep.subr.mxu0 0.0
    %288 = vmatpush1.xpose.msra.mxu0 0.0
    %289 = vmatprep.subr.mxu0 0.0
    %290 = vmatpush1.xpose.msra.mxu0 0.0
    %291 = vmatprep.subr.mxu0 0.0
    %292 = vmatpush1.xpose.msra.mxu0 0.0
    %293 = vmatprep.subr.mxu0 0.0
    %294 = vmatpush1.xpose.msra.mxu0 0.0
    %295 = vmatprep.subr.mxu0 0.0
    %296 = vmatpush1.xpose.msra.mxu0 0.0
    %297 = vmatprep.subr.mxu0 0.0
    %298 = vmatpush1.xpose.msra.mxu0 0.0
    %299 = vmatprep.subr.mxu0 0.0
    %300 = vmatpush1.xpose.msra.mxu0 0.0
    %301 = vmatprep.subr.mxu0 0.0
    %302 = vmatpush1.xpose.msra.mxu0 0.0
    %303 = vmatprep.subr.mxu0 0.0
    %304 = vmatpush1.xpose.msra.mxu0 0.0
    %305 = vmatprep.mubr.f32.mxu0 0.0
    %306 = vmatmul.mubr.f32.gmra.mrb[0].mxu0 %v156
    %v307 = vpop.f32.mrb[0].mxu0
    %v308 = vadd.f32 0.0, %v307
    %v309 = vpop.f32.mrb[0].mxu0
    %310 = vdwg.mxu0
    %311 = vmatprep.subr.mxu0 0.0
    %312 = vmatpush1.xpose.msra.mxu0 %v164
    %313 = vmatprep.subr.mxu0 0.0
    %314 = vmatpush1.xpose.msra.mxu0 0.0
    %315 = vmatprep.subr.mxu0 0.0
    %316 = vmatpush1.xpose.msra.mxu0 0.0
    %317 = vmatprep.subr.mxu0 0.0
    %318 = vmatpush1.xpose.msra.mxu0 0.0
    %319 = vmatprep.subr.mxu0 0.0
    %320 = vmatpush1.xpose.msra.mxu0 0.0
    %321 = vmatprep.subr.mxu0 0.0
    %322 = vmatpush1.xpose.msra.mxu0 0.0
    %323 = vmatprep.subr.mxu0 0.0
    %324 = vmatpush1.xpose.msra.mxu0 0.0
    %325 = vmatprep.subr.mxu0 0.0
    %326 = vmatpush1.xpose.msra.mxu0 0.0
    %327 = vmatprep.subr.mxu0 0.0
    %328 = vmatpush1.xpose.msra.mxu0 0.0
    %329 = vmatprep.subr.mxu0 0.0
    %330 = vmatpush1.xpose.msra.mxu0 0.0
    %331 = vmatprep.subr.mxu0 0.0
    %332 = vmatpush1.xpose.msra.mxu0 0.0
    %333 = vmatprep.subr.mxu0 0.0
    %334 = vmatpush1.xpose.msra.mxu0 0.0
    %335 = vmatprep.subr.mxu0 0.0
    %336 = vmatpush1.xpose.msra.mxu0 0.0
    %337 = vmatprep.subr.mxu0 0.0
    %338 = vmatpush1.xpose.msra.mxu0 0.0
    %339 = vmatprep.subr.mxu0 0.0
    %340 = vmatpush1.xpose.msra.mxu0 0.0
    %341 = vmatprep.subr.mxu0 0.0
    %342 = vmatpush1.xpose.msra.mxu0 0.0
    %343 = vmatprep.subr.mxu0 0.0
    %344 = vmatpush1.xpose.msra.mxu0 0.0
    %345 = vmatprep.subr.mxu0 0.0
    %346 = vmatpush1.xpose.msra.mxu0 0.0
    %347 = vmatprep.subr.mxu0 0.0
    %348 = vmatpush1.xpose.msra.mxu0 0.0
    %349 = vmatprep.subr.mxu0 0.0
    %350 = vmatpush1.xpose.msra.mxu0 0.0
    %351 = vmatprep.subr.mxu0 0.0
    %352 = vmatpush1.xpose.msra.mxu0 0.0
    %353 = vmatprep.subr.mxu0 0.0
    %354 = vmatpush1.xpose.msra.mxu0 0.0
    %355 = vmatprep.subr.mxu0 0.0
    %356 = vmatpush1.xpose.msra.mxu0 0.0
    %357 = vmatprep.subr.mxu0 0.0
    %358 = vmatpush1.xpose.msra.mxu0 0.0
    %359 = vmatprep.subr.mxu0 0.0
    %360 = vmatpush1.xpose.msra.mxu0 0.0
    %361 = vmatprep.subr.mxu0 0.0
    %362 = vmatpush1.xpose.msra.mxu0 0.0
    %363 = vmatprep.subr.mxu0 0.0
    %364 = vmatpush1.xpose.msra.mxu0 0.0
    %365 = vmatprep.subr.mxu0 0.0
    %366 = vmatpush1.xpose.msra.mxu0 0.0
    %367 = vmatprep.subr.mxu0 0.0
    %368 = vmatpush1.xpose.msra.mxu0 0.0
    %369 = vmatprep.subr.mxu0 0.0
    %370 = vmatpush1.xpose.msra.mxu0 0.0
    %371 = vmatprep.subr.mxu0 0.0
    %372 = vmatpush1.xpose.msra.mxu0 0.0
    %373 = vmatprep.subr.mxu0 0.0
    %374 = vmatpush1.xpose.msra.mxu0 0.0
    %375 = vmatprep.mubr.f32.mxu0 0.0
    %376 = vmatmul.mubr.f32.gmra.mrb[0].mxu0 %v162
    %v377 = vpop.f32.mrb[0].mxu0
    %v378 = vadd.f32 0.0, %v377
    %v379 = vpop.f32.mrb[0].mxu0
    %380 = vdwg.mxu0
    %vm381 = vcmask 64512
    %v382 = vsel %vm381, %v308, -inf
    %383 = vmax.xlane.f32.xlu0 %v382
    %v384 = vpop.xlane.xlu0 %383
    %v385 = vsel %vm381, %v378, -inf
    %386 = vmax.xlane.f32.xlu0 %v385
    %v387 = vpop.xlane.xlu0 %386
    %v388 = vsub.f32 %v308, %v384
    %v389 = vsub.f32 %v378, %v387
    %v390 = vmul.f32 %v388, 1.442695
    %v391 = vpow.pop %v390
    %v392 = vmul.f32 %v389, 1.442695
    %v393 = vpow.pop %v392
    %v394 = vsel %vm381, %v391, 0.0
    %395 = vadd.xlane.f32.xlu0 %v394
    %v396 = vpop.xlane.xlu0 %395
    %v397 = vsel %vm381, %v393, 0.0
    %398 = vadd.xlane.f32.xlu0 %v397
    %v399 = vpop.xlane.xlu0 %398
    %v400 = vrcp.pop %v396
    %v401 = vrcp.pop %v399
    %v402 = vmul.f32 %v391, %v400
    %v403 = vmul.f32 %v393, %v401
    %v405 = vsel %vm381, %v402, 0
    %407 = vmatprep.subr.mxu0 0.0
    %408 = vmatpush1.msra.mxu0 %v233
    %409 = vmatprep.subr.mxu0 0.0
    %410 = vmatpush1.msra.mxu0 0.0
    %411 = vmatprep.subr.mxu0 0.0
    %412 = vmatpush1.msra.mxu0 0.0
    %413 = vmatprep.subr.mxu0 0.0
    %414 = vmatpush1.msra.mxu0 0.0
    %415 = vmatprep.subr.mxu0 0.0
    %416 = vmatpush1.msra.mxu0 0.0
    %417 = vmatprep.subr.mxu0 0.0
    %418 = vmatpush1.msra.mxu0 0.0
    %419 = vmatprep.subr.mxu0 0.0
    %420 = vmatpush1.msra.mxu0 0.0
    %421 = vmatprep.subr.mxu0 0.0
    %422 = vmatpush1.msra.mxu0 0.0
    %423 = vmatprep.subr.mxu0 0.0
    %424 = vmatpush1.msra.mxu0 0.0
    %425 = vmatprep.subr.mxu0 0.0
    %426 = vmatpush1.msra.mxu0 0.0
    %427 = vmatprep.subr.mxu0 0.0
    %428 = vmatpush1.msra.mxu0 0.0
    %429 = vmatprep.subr.mxu0 0.0
    %430 = vmatpush1.msra.mxu0 0.0
    %431 = vmatprep.subr.mxu0 0.0
    %432 = vmatpush1.msra.mxu0 0.0
    %433 = vmatprep.subr.mxu0 0.0
    %434 = vmatpush1.msra.mxu0 0.0
    %435 = vmatprep.subr.mxu0 0.0
    %436 = vmatpush1.msra.mxu0 0.0
    %437 = vmatprep.subr.mxu0 0.0
    %438 = vmatpush1.msra.mxu0 0.0
    %439 = vmatprep.subr.mxu0 0.0
    %440 = vmatpush1.msra.mxu0 0.0
    %441 = vmatprep.subr.mxu0 0.0
    %442 = vmatpush1.msra.mxu0 0.0
    %443 = vmatprep.subr.mxu0 0.0
    %444 = vmatpush1.msra.mxu0 0.0
    %445 = vmatprep.subr.mxu0 0.0
    %446 = vmatpush1.msra.mxu0 0.0
    %447 = vmatprep.subr.mxu0 0.0
    %448 = vmatpush1.msra.mxu0 0.0
    %449 = vmatprep.subr.mxu0 0.0
    %450 = vmatpush1.msra.mxu0 0.0
    %451 = vmatprep.subr.mxu0 0.0
    %452 = vmatpush1.msra.mxu0 0.0
    %453 = vmatprep.subr.mxu0 0.0
    %454 = vmatpush1.msra.mxu0 0.0
    %455 = vmatprep.subr.mxu0 0.0
    %456 = vmatpush1.msra.mxu0 0.0
    %457 = vmatprep.subr.mxu0 0.0
    %458 = vmatpush1.msra.mxu0 0.0
    %459 = vmatprep.subr.mxu0 0.0
    %460 = vmatpush1.msra.mxu0 0.0
    %461 = vmatprep.subr.mxu0 0.0
    %462 = vmatpush1.msra.mxu0 0.0
    %463 = vmatprep.subr.mxu0 0.0
    %464 = vmatpush1.msra.mxu0 0.0
    %465 = vmatprep.subr.mxu0 0.0
    %466 = vmatpush1.msra.mxu0 0.0
    %467 = vmatprep.subr.mxu0 0.0
    %468 = vmatpush1.msra.mxu0 0.0
    %469 = vmatprep.subr.mxu0 0.0
    %470 = vmatpush1.msra.mxu0 0.0
    %471 = vmatprep.mubr.f32.mxu0 0.0
    %472 = vmatmul.mubr.f32.gmra.mrb[0].mxu0 %v405
    %v473 = vpop.f32.mrb[0].mxu0
    %v474 = vadd.f32 0.0, %v473
    %v475 = vpop.f32.mrb[0].mxu0
    %476 = vdwg.mxu0
    %v478 = vsel %vm381, %v403, 0
    %480 = vmatprep.subr.mxu0 0.0
    %481 = vmatpush1.msra.mxu0 %v238
    %482 = vmatprep.subr.mxu0 0.0
    %483 = vmatpush1.msra.mxu0 0.0
    %484 = vmatprep.subr.mxu0 0.0
    %485 = vmatpush1.msra.mxu0 0.0
    %486 = vmatprep.subr.mxu0 0.0
    %487 = vmatpush1.msra.mxu0 0.0
    %488 = vmatprep.subr.mxu0 0.0
    %489 = vmatpush1.msra.mxu0 0.0
    %490 = vmatprep.subr.mxu0 0.0
    %491 = vmatpush1.msra.mxu0 0.0
    %492 = vmatprep.subr.mxu0 0.0
    %493 = vmatpush1.msra.mxu0 0.0
    %494 = vmatprep.subr.mxu0 0.0
    %495 = vmatpush1.msra.mxu0 0.0
    %496 = vmatprep.subr.mxu0 0.0
    %497 = vmatpush1.msra.mxu0 0.0
    %498 = vmatprep.subr.mxu0 0.0
    %499 = vmatpush1.msra.mxu0 0.0
    %500 = vmatprep.subr.mxu0 0.0
    %501 = vmatpush1.msra.mxu0 0.0
    %502 = vmatprep.subr.mxu0 0.0
    %503 = vmatpush1.msra.mxu0 0.0
    %504 = vmatprep.subr.mxu0 0.0
    %505 = vmatpush1.msra.mxu0 0.0
    %506 = vmatprep.subr.mxu0 0.0
    %507 = vmatpush1.msra.mxu0 0.0
    %508 = vmatprep.subr.mxu0 0.0
    %509 = vmatpush1.msra.mxu0 0.0
    %510 = vmatprep.subr.mxu0 0.0
    %511 = vmatpush1.msra.mxu0 0.0
    %512 = vmatprep.subr.mxu0 0.0
    %513 = vmatpush1.msra.mxu0 0.0
    %514 = vmatprep.subr.mxu0 0.0
    %515 = vmatpush1.msra.mxu0 0.0
    %516 = vmatprep.subr.mxu0 0.0
    %517 = vmatpush1.msra.mxu0 0.0
    %518 = vmatprep.subr.mxu0 0.0
    %519 = vmatpush1.msra.mxu0 0.0
    %520 = vmatprep.subr.mxu0 0.0
    %521 = vmatpush1.msra.mxu0 0.0
    %522 = vmatprep.subr.mxu0 0.0
    %523 = vmatpush1.msra.mxu0 0.0
    %524 = vmatprep.subr.mxu0 0.0
    %525 = vmatpush1.msra.mxu0 0.0
    %526 = vmatprep.subr.mxu0 0.0
    %527 = vmatpush1.msra.mxu0 0.0
    %528 = vmatprep.subr.mxu0 0.0
    %529 = vmatpush1.msra.mxu0 0.0
    %530 = vmatprep.subr.mxu0 0.0
    %531 = vmatpush1.msra.mxu0 0.0
    %532 = vmatprep.subr.mxu0 0.0
    %533 = vmatpush1.msra.mxu0 0.0
    %534 = vmatprep.subr.mxu0 0.0
    %535 = vmatpush1.msra.mxu0 0.0
    %536 = vmatprep.subr.mxu0 0.0
    %537 = vmatpush1.msra.mxu0 0.0
    %538 = vmatprep.subr.mxu0 0.0
    %539 = vmatpush1.msra.mxu0 0.0
    %540 = vmatprep.subr.mxu0 0.0
    %541 = vmatpush1.msra.mxu0 0.0
    %542 = vmatprep.subr.mxu0 0.0
    %543 = vmatpush1.msra.mxu0 0.0
    %544 = vmatprep.mubr.f32.mxu0 0.0
    %545 = vmatmul.mubr.f32.gmra.mrb[0].mxu0 %v478
    %v546 = vpop.f32.mrb[0].mxu0
    %v547 = vadd.f32 0.0, %v546
    %v548 = vpop.f32.mrb[0].mxu0
    %549 = vdwg.mxu0
    %v551 = vsel %vm82, %v474, 0
    %v554 = vsel %vm82, %v547, 0
    %556 = vmatprep.subr.mxu0 0.0
    %557 = vmatpush1.msra.mxu0 %v55
    %558 = vmatprep.subr.mxu0 0.0
    %559 = vmatpush1.msra.mxu0 %v56
    %560 = vmatprep.subr.mxu0 0.0
    %561 = vmatpush1.msra.mxu0 %v57
    %562 = vmatprep.subr.mxu0 0.0
    %563 = vmatpush1.msra.mxu0 %v58
    %564 = vmatprep.subr.mxu0 0.0
    %565 = vmatpush1.msra.mxu0 0.0
    %566 = vmatprep.subr.mxu0 0.0
    %567 = vmatpush1.msra.mxu0 0.0
    %568 = vmatprep.subr.mxu0 0.0
    %569 = vmatpush1.msra.mxu0 0.0
    %570 = vmatprep.subr.mxu0 0.0
    %571 = vmatpush1.msra.mxu0 0.0
    %572 = vmatprep.subr.mxu0 0.0
    %573 = vmatpush1.msra.mxu0 0.0
    %574 = vmatprep.subr.mxu0 0.0
    %575 = vmatpush1.msra.mxu0 0.0
    %576 = vmatprep.subr.mxu0 0.0
    %577 = vmatpush1.msra.mxu0 0.0
    %578 = vmatprep.subr.mxu0 0.0
    %579 = vmatpush1.msra.mxu0 0.0
    %580 = vmatprep.subr.mxu0 0.0
    %581 = vmatpush1.msra.mxu0 0.0
    %582 = vmatprep.subr.mxu0 0.0
    %583 = vmatpush1.msra.mxu0 0.0
    %584 = vmatprep.subr.mxu0 0.0
    %585 = vmatpush1.msra.mxu0 0.0
    %586 = vmatprep.subr.mxu0 0.0
    %587 = vmatpush1.msra.mxu0 0.0
    %588 = vmatprep.subr.mxu0 0.0
    %589 = vmatpush1.msra.mxu0 0.0
    %590 = vmatprep.subr.mxu0 0.0
    %591 = vmatpush1.msra.mxu0 0.0
    %592 = vmatprep.subr.mxu0 0.0
    %593 = vmatpush1.msra.mxu0 0.0
    %594 = vmatprep.subr.mxu0 0.0
    %595 = vmatpush1.msra.mxu0 0.0
    %596 = vmatprep.subr.mxu0 0.0
    %597 = vmatpush1.msra.mxu0 0.0
    %598 = vmatprep.subr.mxu0 0.0
    %599 = vmatpush1.msra.mxu0 0.0
    %600 = vmatprep.subr.mxu0 0.0
    %601 = vmatpush1.msra.mxu0 0.0
    %602 = vmatprep.subr.mxu0 0.0
    %603 = vmatpush1.msra.mxu0 0.0
    %604 = vmatprep.subr.mxu0 0.0
    %605 = vmatpush1.msra.mxu0 0.0
    %606 = vmatprep.subr.mxu0 0.0
    %607 = vmatpush1.msra.mxu0 0.0
    %608 = vmatprep.subr.mxu0 0.0
    %609 = vmatpush1.msra.mxu0 0.0
    %610 = vmatprep.subr.mxu0 0.0
    %611 = vmatpush1.msra.mxu0 0.0
    %612 = vmatprep.subr.mxu0 0.0
    %613 = vmatpush1.msra.mxu0 0.0
    %614 = vmatprep.subr.mxu0 0.0
    %615 = vmatpush1.msra.mxu0 0.0
    %616 = vmatprep.subr.mxu0 0.0
    %617 = vmatpush1.msra.mxu0 0.0
    %618 = vmatprep.subr.mxu0 0.0
    %619 = vmatpush1.msra.mxu0 0.0
    %620 = vmatprep.mubr.f32.mxu0 0.0
    %621 = vmatmul.mubr.f32.gmra.mrb[0].mxu0 %v551
    %v622 = vpop.f32.mrb[0].mxu0
    %v623 = vadd.f32 %v61, %v622
    %v624 = vpop.f32.mrb[0].mxu0
    %625 = vmatprep.mubr.f32.mxu0 0.0
    %626 = vmatmul.mubr.f32.gmra.mrb[0].mxu0 %v554
    %v627 = vpop.f32.mrb[0].mxu0
    %v628 = vadd.f32 %v61, %v627
    %v629 = vpop.f32.mrb[0].mxu0
    %630 = vdwg.mxu0
    %v631 = vsel %vm82, %v623, 0.0
    %632 = vadd.xlane.f32.xlu0 %v631
    %v633 = vpop.xlane.xlu0 %632
    %v634 = vsel %vm82, %v628, 0.0
    %635 = vadd.xlane.f32.xlu0 %v634
    %v636 = vpop.xlane.xlu0 %635
    %v637 = vrcp.pop 32.0
    %v638 = vmul.f32 %v633, %v637
    %v639 = vmul.f32 %v636, %v637
    %v640 = vmul.f32 %v623, %v623
    %v641 = vmul.f32 %v628, %v628
    %v642 = vsel %vm82, %v640, 0.0
    %643 = vadd.xlane.f32.xlu0 %v642
    %v644 = vpop.xlane.xlu0 %643
    %v645 = vsel %vm82, %v641, 0.0
    %646 = vadd.xlane.f32.xlu0 %v645
    %v647 = vpop.xlane.xlu0 %646
    %v648 = vmul.f32 %v644, %v637
    %v649 = vmul.f32 %v647, %v637
    %v650 = vmul.f32 %v638, %v638
    %v651 = vmul.f32 %v639, %v639
    %v652 = vsub.f32 %v648, %v650
    %v653 = vsub.f32 %v649, %v651
    %v654 = vsub.f32 %v623, %v638
    %v655 = vsub.f32 %v628, %v639
    %v656 = vadd.f32 %v652, 1e-05
    %v657 = vadd.f32 %v653, 1e-05
    %v658 = vrsqrt.pop %v656
    %v659 = vrsqrt.pop %v657
    %v660 = vmul.f32 %v654, %v658
    %v661 = vmul.f32 %v655, %v659
    %v662 = vmul.f32 %v660, %v62
    %v663 = vmul.f32 %v661, %v62
    %v664 = vadd.f32 %v662, %v63
    %v665 = vadd.f32 %v663, %v63
    %v666 = vadd.f32 %v64, %v664
    %v667 = vadd.f32 %v65, %v665
    %668 = vst.msk [vmem:[#allocation7] sm:$0xff] %vm82, %v666
    %669 = vst.msk [vmem:[#allocation7 + $0x8] sm:$0xff] %vm82, %v667
    %670 = vst.msk [vmem:[#allocation8] sm:$0xff] %vm381, %v402
    %671 = vst.msk [vmem:[#allocation8 + $0x8] sm:$0xff] %vm381, %v403
    // Predicated region
    $region18: #{psycho_encoder_forward.1} parent=1 // pred_check
      _
    $region19: #{psycho_encoder_forward.1} parent=1 // pred_check_branch
      %673 = sbr.rel (0) target = $region21
    $region20: #{psycho_encoder_forward.1} parent=1 // pred_region
      %s675 = ssub.s32 256, 256
      %676 = vsyncadd [#allocation4], %s675
      %s677 = sshll.u32 [#allocation7], 4
      %s678 = int_to_ptr.vmem [resolvable:$true] %s677
      %683 = dma.vmem_to_hbm [thread:$0]  %s678, 256, %s2, [#allocation4], 128, 128, 8
    $region21: #{psycho_encoder_forward.1} parent=1 // pred_fallthru
      _
    // Predicated region
    $region22: #{psycho_encoder_forward.1} parent=1 // pred_check
      _
    $region23: #{psycho_encoder_forward.1} parent=1 // pred_check_branch
      %685 = sbr.rel (0) target = $region25
    $region24: #{psycho_encoder_forward.1} parent=1 // pred_region
      %s687 = ssub.s32 256, 256
      %688 = vsyncadd [#allocation9], %s687
      %s689 = sshll.u32 [#allocation8], 4
      %s690 = int_to_ptr.vmem [resolvable:$true] %s689
      %695 = dma.vmem_to_hbm [thread:$0]  %s690, 256, %s3, [#allocation9], 128, 128, 8
    $region25: #{psycho_encoder_forward.1} parent=1 // pred_fallthru
      _
    // Predicated region
    $region26: #{psycho_encoder_forward.1} parent=1 // pred_check
      _
    $region27: #{psycho_encoder_forward.1} parent=1 // pred_check_branch
      %697 = sbr.rel (0) target = $region29
    $region28: #{psycho_encoder_forward.1} parent=1 // pred_region
      %698 = dma.done [#allocation4], 256
    $region29: #{psycho_encoder_forward.1} parent=1 // pred_fallthru
      _
    // Predicated region
    $region30: #{psycho_encoder_forward.1} parent=1 // pred_check
      _
    $region31: #{psycho_encoder_forward.1} parent=1 // pred_check_branch
      %700 = sbr.rel (0) target = $region33
    $region32: #{psycho_encoder_forward.1} parent=1 // pred_region
      %701 = dma.done [#allocation9], 256
    $region33: #{psycho_encoder_forward.1} parent=1 // pred_fallthru
      _
    %702 = vsyncpa [#allocation3], 1
    %703 = vsyncpa [#allocation6], 1
    %704 = vsyncpa [#allocation4], 1
    %705 = vsyncpa [#allocation9], 1

</llo_original>
